<compile_context>
chip_gen: v5e
topology: v5e:2x2
jax: 0.10.0
libtpu: 0.0.40
codegen_flags: <defaults>
</compile_context>

<pallas_src>
import functools

import jax
import jax.numpy as jnp
from jax.experimental import pallas as pl
from jax.experimental.pallas import tpu as pltpu


PACK = 8  # batch rows packed per lane-row:  PACK * D_code(16) = 128 lanes


# --------------------------------------------------------------------------- #
# Kernel
# --------------------------------------------------------------------------- #
def _hashcode_kernel(x_ref, w1_ref, b1_ref, w2_ref, b2_ref, *rest,
                     tanh_temp, normalize, split_w1):
    """One packed batch tile.

    x_ref : [T, PACK*D_in]   bf16  (8 original rows interleaved along lanes)
    w1_ref: [PACK*D_in, PACK*H]      bf16, block-diagonal (8 copies of W1)
    b1_ref: [1, PACK*H]              f32
    w2_ref: [PACK*H, PACK*D_code]    bf16, block-diagonal (8 copies of W2)
    b2_ref: [1, PACK*D_code]         f32
    g_ref : [PACK*D_code, PACK*D_code] bf16 block-diag ones (normalize only)
    o_ref : [T, PACK*D_code]  caller dtype (lane-dense packed output)
    """
    if normalize:
        g_ref, o_ref = rest
    else:
        (o_ref,) = rest

    x = x_ref[...]                                   # bf16

    if split_w1:
        # v5e: the block-diagonal W1 has all-zero off-diagonal 128-quadrants;
        # issue only the two nonzero quadrants (and split W2's K to match) so
        # the 128x128 MXU skips the zero passes.
        hin = x.shape[-1] // 2
        hh = w1_ref.shape[-1] // 2
        h_lo = jnp.maximum(
            jnp.dot(x[:, :hin], w1_ref[:hin, :hh],
                    preferred_element_type=jnp.float32) + b1_ref[:, :hh], 0.0)
        h_hi = jnp.maximum(
            jnp.dot(x[:, hin:], w1_ref[hin:, hh:],
                    preferred_element_type=jnp.float32) + b1_ref[:, hh:], 0.0)
        code = (jnp.dot(h_lo.astype(w2_ref.dtype), w2_ref[:hh, :],
                        preferred_element_type=jnp.float32)
                + jnp.dot(h_hi.astype(w2_ref.dtype), w2_ref[hh:, :],
                          preferred_element_type=jnp.float32)
                + b2_ref[...])
    else:
        # Linear 1 (bf16 MXU, f32 accumulate) + bias + ReLU (f32 VPU).
        h = jnp.maximum(
            jnp.dot(x, w1_ref[...], preferred_element_type=jnp.float32)
            + b1_ref[...], 0.0)
        # Linear 2.
        code = jnp.dot(h.astype(w2_ref.dtype), w2_ref[...],
                       preferred_element_type=jnp.float32) + b2_ref[...]

    if normalize:
        # Per-original-row sum of squares, broadcast within each 16-lane group,
        # via a block-diagonal-ones matmul (keeps the epilogue lane-dense).
        # TODO(synk): if MXU-bound, move this 16-lane segmented reduce to the
        # XLU with strided pltpu.roll + adds instead of a matmul.
        sq = (code * code).astype(g_ref.dtype)
        ssq = jnp.dot(sq, g_ref[...], preferred_element_type=jnp.float32)
        out = code * jax.lax.rsqrt(ssq)              # code / ||code||
    else:
        out = jnp.tanh(tanh_temp * code)             # tanh(TANH_TEMP * code)

    o_ref[...] = out.astype(o_ref.dtype)


# --------------------------------------------------------------------------- #
# Wrapper
# --------------------------------------------------------------------------- #
def _round_up(x, m):
    return ((x + m - 1) // m) * m


def _cdiv(a, b):
    return (a + b - 1) // b


def _block_diag(w, pack):
    """[a, b] -> [pack*a, pack*b] with `pack` copies of w on the diagonal."""
    a, b = w.shape
    eye = jnp.eye(pack, dtype=w.dtype)
    return (eye[:, None, :, None] * w[None, :, None, :]).reshape(pack * a, pack * b)


@functools.lru_cache(maxsize=1)
def _default_split_w1():
    """Enable the W1 quadrant split on v5-generation TPUs (128x128 MXU)."""
    try:
        kind = jax.devices()[0].device_kind.lower()
    except Exception:
        return False
    return "v5" in kind


@functools.partial(
    jax.jit,
    static_argnames=("tanh_temp", "normalize", "tile_rows", "split_w1",
                     "compute_dtype"))
def _hashcode_forward_impl(fmaps, w1, b1, w2, b2, *, tanh_temp, normalize,
                           tile_rows, split_w1, compute_dtype):
    N, D_in = fmaps.shape
    H = w1.shape[1]
    D_code = w2.shape[1]
    assert (PACK * D_code) % 128 == 0, (
        "packed output width must be a multiple of 128 lanes "
        "(this config hard-codes hcode_dim=16 with PACK=8)")

    out_dtype = fmaps.dtype
    # Sublane granule: 8 for f32, 16 for bf16, 32 for 1-byte dtypes.
    sub = max(8, 32 // min(jnp.dtype(compute_dtype).itemsize,
                           jnp.dtype(out_dtype).itemsize))

    # --- row-packing geometry (pad only to PACK*sub rows, <= 127 rows) -----
    N_pad = _round_up(N, PACK * sub)
    n_packed = N_pad // PACK                         # multiple of `sub`
    tile_rows = max(sub, _round_up(int(tile_rows), sub))
    # Ensure >=2 grid steps for big batches so the "parallel" axis engages both
    # TensorCores on v7x (and megacore sharding elsewhere).
    if n_packed >= 2 * 64:
        tile_rows = min(tile_rows, _round_up(_cdiv(n_packed, 2), sub))
    tile_rows = min(tile_rows, n_packed)
    grid = (_cdiv(n_packed, tile_rows),)             # ragged last block is OK

    # --- pack x: 8 consecutive rows -> one 256-lane row, cast to bf16 ------
    x = fmaps
    if N_pad != N:
        x = jnp.pad(x, ((0, N_pad - N), (0, 0)))     # tiny; fuses with the cast
    x_packed = x.reshape(n_packed, PACK * D_in).astype(compute_dtype)

    # --- block-diagonal parameter packing (tiny, fused under jit) ----------
    w1b = _block_diag(w1.astype(compute_dtype), PACK)                 # [256,256]
    w2b = _block_diag(w2.astype(compute_dtype), PACK)                 # [256,128]
    b1t = jnp.tile(jnp.reshape(b1, (1, H)).astype(jnp.float32), (1, PACK))
    b2t = jnp.tile(jnp.reshape(b2, (1, D_code)).astype(jnp.float32), (1, PACK))

    # Quadrant split only valid/beneficial when the halves are 128-aligned.
    half_in = (PACK // 2) * D_in
    half_h = (PACK // 2) * H
    split_w1 = bool(split_w1) and (half_in % 128 == 0) and (half_h % 128 == 0)

    kernel = functools.partial(_hashcode_kernel,
                               tanh_temp=float(tanh_temp),
                               normalize=bool(normalize),
                               split_w1=split_w1)

    in_specs = [
        pl.BlockSpec((tile_rows, PACK * D_in), lambda i: (i, 0)),     # x (packed)
        pl.BlockSpec((PACK * D_in, PACK * H), lambda i: (0, 0)),      # W1 (resident)
        pl.BlockSpec((1, PACK * H), lambda i: (0, 0)),                # b1 tiled
        pl.BlockSpec((PACK * H, PACK * D_code), lambda i: (0, 0)),    # W2 (resident)
        pl.BlockSpec((1, PACK * D_code), lambda i: (0, 0)),           # b2 tiled
    ]
    args = [x_packed, w1b, b1t, w2b, b2t]
    if normalize:
        gmat = _block_diag(jnp.ones((D_code, D_code), compute_dtype), PACK)
        in_specs.append(
            pl.BlockSpec((PACK * D_code, PACK * D_code), lambda i: (0, 0)))
        args.append(gmat)

    out_packed = pl.pallas_call(
        kernel,
        out_shape=jax.ShapeDtypeStruct((n_packed, PACK * D_code), out_dtype),
        grid_spec=pltpu.PrefetchScalarGridSpec(
            num_scalar_prefetch=0,
            grid=grid,
            in_specs=in_specs,
            out_specs=pl.BlockSpec((tile_rows, PACK * D_code), lambda i: (i, 0)),
        ),
        compiler_params=pltpu.CompilerParams(
            dimension_semantics=("parallel",)),
    )(*args)

    # Free reshape back to [N_pad, D_code]; drop padded rows.
    out = out_packed.reshape(N_pad, D_code)
    if N_pad != N:
        out = out[:N]
    return out


def hashcode_forward(fmaps, w1, b1, w2, b2, *, tanh_temp=1.0,
                     loss_type="permgnn_loss", tile_rows=1024,
                     compute_dtype=jnp.bfloat16, split_w1=None):
    """fmaps: [N, D_in].  w1: [D_in, H], b1: [H]/[1,H], w2: [H, D_code], b2: [D_code]/[1,D_code]."""
    normalize = loss_type not in ("permgnn_loss", "sc_loss")
    if split_w1 is None:
        split_w1 = _default_split_w1()
    return _hashcode_forward_impl(
        fmaps, w1, b1, w2, b2,
        tanh_temp=float(tanh_temp), normalize=bool(normalize),
        tile_rows=int(tile_rows), split_w1=bool(split_w1),
        compute_dtype=compute_dtype)


def hashcode_forward_ref(fmaps, w1, b1, w2, b2, *, tanh_temp=1.0,
                         loss_type="permgnn_loss"):
    """Pure-JAX f32 reference matching the PyTorch forward."""
    h = jnp.maximum(fmaps @ w1 + jnp.reshape(b1, (1, -1)), 0.0)
    code = h @ w2 + jnp.reshape(b2, (1, -1))
    if loss_type in ("permgnn_loss", "sc_loss"):
        return jnp.tanh(tanh_temp * code)
    return code / jnp.linalg.norm(code, axis=-1, keepdims=True)


if __name__ == "__main__":
    # Config implied by HashCodeTrainer.__init__ (FMAP_SELECT == -1 branch).
    m_use, embed_dim = 1, 8
    D_in = m_use * embed_dim * 4          # 32
    HIDDEN = 32                           # av.HIDDEN_LAYERS = [32]
    D_code = 16                           # av.hcode_dim
    TANH_TEMP = 1.5

    key = jax.random.PRNGKey(0)
    k_x, k_w1, k_b1, k_w2, k_b2 = jax.random.split(key, 5)

    # Deterministic parameters (torch Linear stores W as [out, in]; pass W.T).
    w1 = (jax.random.normal(k_w1, (HIDDEN, D_in), dtype=jnp.float32) * 0.1).T   # [D_in, H]
    b1 = jax.random.normal(k_b1, (1, HIDDEN), dtype=jnp.float32) * 0.1
    w2 = (jax.random.normal(k_w2, (D_code, HIDDEN), dtype=jnp.float32) * 0.1).T  # [H, D_code]
    b2 = jax.random.normal(k_b2, (1, D_code), dtype=jnp.float32) * 0.1

    TOL = dict(atol=3e-2, rtol=1e-2)   # bf16 input/weight path vs f32 reference

    # --- Test 1: tanh branch, tiny batch, single grid step ------------------
    N1 = 64
    x1 = jax.random.normal(k_x, (N1, D_in), dtype=jnp.float32)
    out1 = jax.block_until_ready(
        hashcode_forward(x1, w1, b1, w2, b2, tanh_temp=TANH_TEMP,
                         loss_type="permgnn_loss"))
    ref1 = hashcode_forward_ref(x1, w1, b1, w2, b2, tanh_temp=TANH_TEMP,
                                loss_type="permgnn_loss")
    assert out1.shape == ref1.shape and out1.dtype == x1.dtype
    assert jnp.allclose(out1, ref1, **TOL)

    # --- Test 2: L2-normalize branch, batch NOT a multiple of PACK ----------
    N2 = 50
    x2 = jax.random.normal(jax.random.fold_in(k_x, 1), (N2, D_in), dtype=jnp.float32)
    out2 = jax.block_until_ready(
        hashcode_forward(x2, w1, b1, w2, b2, tanh_temp=TANH_TEMP,
                         loss_type="dot_ap"))
    ref2 = hashcode_forward_ref(x2, w1, b1, w2, b2, tanh_temp=TANH_TEMP,
                                loss_type="dot_ap")
    assert jnp.allclose(out2, ref2, **TOL)

    # --- Test 3: forced W1 quadrant split (v5e path) + multi-step grid ------
    N3 = 200
    x3 = jax.random.normal(jax.random.fold_in(k_x, 2), (N3, D_in), dtype=jnp.float32)
    out3 = jax.block_until_ready(
        hashcode_forward(x3, w1, b1, w2, b2, tanh_temp=TANH_TEMP,
                         loss_type="permgnn_loss", tile_rows=8, split_w1=True))
    ref3 = hashcode_forward_ref(x3, w1, b1, w2, b2, tanh_temp=TANH_TEMP,
                                loss_type="permgnn_loss")
    assert jnp.allclose(out3, ref3, **TOL)

    # --- Test 4: normalize branch, ragged last grid block -------------------
    N4 = 777
    x4 = jax.random.normal(jax.random.fold_in(k_x, 3), (N4, D_in), dtype=jnp.float32)
    out4 = jax.block_until_ready(
        hashcode_forward(x4, w1, b1, w2, b2, tanh_temp=TANH_TEMP,
                         loss_type="dot_ap", tile_rows=48))
    ref4 = hashcode_forward_ref(x4, w1, b1, w2, b2, tanh_temp=TANH_TEMP,
                                loss_type="dot_ap")
    assert jnp.allclose(out4, ref4, **TOL)

    # --- Test 5: larger batch, default tiling (2-step parallel grid) --------
    N5 = 4096
    x5 = jax.random.normal(jax.random.fold_in(k_x, 4), (N5, D_in), dtype=jnp.float32)
    out5 = jax.block_until_ready(
        hashcode_forward(x5, w1, b1, w2, b2, tanh_temp=TANH_TEMP,
                         loss_type="permgnn_loss"))
    ref5 = hashcode_forward_ref(x5, w1, b1, w2, b2, tanh_temp=TANH_TEMP,
                                loss_type="permgnn_loss")
    assert jnp.allclose(out5, ref5, **TOL)

    print("KERNEL_OK")
</pallas_src>

<mosaic_0001>
module attributes {stable_mosaic.version = 11 : i64} {
  func.func @_hashcode_kernel(%arg0: i32, %arg1: memref<16x256xbf16, #tpu.memory_space<vmem>>, %arg2: memref<256x256xbf16, #tpu.memory_space<vmem>>, %arg3: memref<1x256xf32, #tpu.memory_space<vmem>>, %arg4: memref<256x128xbf16, #tpu.memory_space<vmem>>, %arg5: memref<1x128xf32, #tpu.memory_space<vmem>>, %arg6: memref<16x128xf32, #tpu.memory_space<vmem>>) attributes {dimension_semantics = [#tpu.dimension_semantics<parallel>], iteration_bounds = array<i64: 1>, scalar_prefetch = 0 : i64, scratch_operands = 0 : i64, tpu.core_type = #tpu.core_type<tc>, window_params = [{transform_indices = @transform_0, window_bounds = array<i64: 16, 256>}, {pipeline_mode = #tpu.pipeline_mode<synchronous>, transform_indices = @transform_1, window_bounds = array<i64: 256, 256>}, {pipeline_mode = #tpu.pipeline_mode<synchronous>, transform_indices = @transform_2, window_bounds = array<i64: 1, 256>}, {pipeline_mode = #tpu.pipeline_mode<synchronous>, transform_indices = @transform_3, window_bounds = array<i64: 256, 128>}, {pipeline_mode = #tpu.pipeline_mode<synchronous>, transform_indices = @transform_4, window_bounds = array<i64: 1, 128>}, {transform_indices = @transform_5, window_bounds = array<i64: 16, 128>}]} {
    %c0 = arith.constant 0 : index
    %c0_0 = arith.constant 0 : index
    %0 = vector.load %arg1[%c0, %c0_0] : memref<16x256xbf16, #tpu.memory_space<vmem>>, vector<16x256xbf16>
    %c0_1 = arith.constant 0 : index
    %c0_2 = arith.constant 0 : index
    %1 = vector.load %arg2[%c0_1, %c0_2] : memref<256x256xbf16, #tpu.memory_space<vmem>>, vector<256x256xbf16>
    %cst = arith.constant dense<0.000000e+00> : vector<16x256xf32>
    %2 = tpu.matmul %0, %1, %cst {dimension_numbers = #tpu.dot_dimension_numbers<[1], [0], [0], [1], [0, 0, 1, 1], [], []>} : vector<16x256xbf16>, vector<256x256xbf16>, vector<16x256xf32> -> vector<16x256xf32>
    %c0_3 = arith.constant 0 : index
    %c0_4 = arith.constant 0 : index
    %3 = vector.load %arg3[%c0_3, %c0_4] : memref<1x256xf32, #tpu.memory_space<vmem>>, vector<1x256xf32>
    %4 = vector.broadcast %3 : vector<1x256xf32> to vector<16x256xf32>
    %5 = arith.addf %2, %4 : vector<16x256xf32>
    %cst_5 = arith.constant 0.000000e+00 : f32
    %6 = vector.broadcast %cst_5 : f32 to vector<16x256xf32>
    %7 = arith.maximumf %5, %6 : vector<16x256xf32>
    %8 = arith.truncf %7 : vector<16x256xf32> to vector<16x256xbf16>
    %c0_6 = arith.constant 0 : index
    %c0_7 = arith.constant 0 : index
    %9 = vector.load %arg4[%c0_6, %c0_7] : memref<256x128xbf16, #tpu.memory_space<vmem>>, vector<256x128xbf16>
    %cst_8 = arith.constant dense<0.000000e+00> : vector<16x128xf32>
    %10 = tpu.matmul %8, %9, %cst_8 {dimension_numbers = #tpu.dot_dimension_numbers<[1], [0], [0], [1], [0, 0, 1, 1], [], []>} : vector<16x256xbf16>, vector<256x128xbf16>, vector<16x128xf32> -> vector<16x128xf32>
    %c0_9 = arith.constant 0 : index
    %c0_10 = arith.constant 0 : index
    %11 = vector.load %arg5[%c0_9, %c0_10] : memref<1x128xf32, #tpu.memory_space<vmem>>, vector<1x128xf32>
    %12 = vector.broadcast %11 : vector<1x128xf32> to vector<16x128xf32>
    %13 = arith.addf %10, %12 : vector<16x128xf32>
    %cst_11 = arith.constant 1.500000e+00 : f32
    %14 = vector.broadcast %cst_11 : f32 to vector<16x128xf32>
    %15 = arith.mulf %14, %13 : vector<16x128xf32>
    %16 = math.tanh %15 : vector<16x128xf32>
    %c0_12 = arith.constant 0 : index
    %c0_13 = arith.constant 0 : index
    %17 = vector.load %arg6[%c0_12, %c0_13] : memref<16x128xf32, #tpu.memory_space<vmem>>, vector<16x128xf32>
    tpu.vector_store %arg6[%c0_12, %c0_13], %16 {strides = array<i32>} : memref<16x128xf32, #tpu.memory_space<vmem>>, vector<16x128xf32>,
    return
  }
  func.func @transform_0(%arg0: i32) -> (i32, i32) {
    %c0_i32 = arith.constant 0 : i32
    %c0_i32_0 = arith.constant 0 : i32
    return %arg0, %c0_i32 : i32, i32
  }
  func.func @transform_1(%arg0: i32) -> (i32, i32) {
    %c0_i32 = arith.constant 0 : i32
    %c0_i32_0 = arith.constant 0 : i32
    %c0_i32_1 = arith.constant 0 : i32
    return %c0_i32, %c0_i32_0 : i32, i32
  }
  func.func @transform_2(%arg0: i32) -> (i32, i32) {
    %c0_i32 = arith.constant 0 : i32
    %c0_i32_0 = arith.constant 0 : i32
    %c0_i32_1 = arith.constant 0 : i32
    return %c0_i32, %c0_i32_0 : i32, i32
  }
  func.func @transform_3(%arg0: i32) -> (i32, i32) {
    %c0_i32 = arith.constant 0 : i32
    %c0_i32_0 = arith.constant 0 : i32
    %c0_i32_1 = arith.constant 0 : i32
    return %c0_i32, %c0_i32_0 : i32, i32
  }
  func.func @transform_4(%arg0: i32) -> (i32, i32) {
    %c0_i32 = arith.constant 0 : i32
    %c0_i32_0 = arith.constant 0 : i32
    %c0_i32_1 = arith.constant 0 : i32
    return %c0_i32, %c0_i32_0 : i32, i32
  }
  func.func @transform_5(%arg0: i32) -> (i32, i32) {
    %c0_i32 = arith.constant 0 : i32
    %c0_i32_0 = arith.constant 0 : i32
    return %arg0, %c0_i32 : i32, i32
  }
}

</mosaic_0001>

<llo_original>
// kernel: _hashcode_forward_impl.1
$region0: #{_hashcode_forward_impl.1}
  #allocation0 [shape = 'u32[]', space=smem, size = 0x4, offset = 0x4, fixed_abs, tag = 'smem constant byte address 0x4 - core index']
  #allocation1 [shape = 'u32[72,128]{1,0:T(1,128)}', space=vmem, size = 0x9000, scoped, tag = 'internal scratch']
  %s0 = inlined_call_operand.vmem [shape: bf16[16,256], index: 0, kind: input, shape index: {}]
  %s1 = inlined_call_operand.vmem [shape: bf16[256,256], index: 1, kind: input, shape index: {}]
  %s2 = inlined_call_operand.vmem [shape: f32[1,256], index: 2, kind: input, shape index: {}]
  %s3 = inlined_call_operand.vmem [shape: bf16[256,128], index: 3, kind: input, shape index: {}]
  %s4 = inlined_call_operand.vmem [shape: f32[1,128], index: 4, kind: input, shape index: {}]
  %s5 = inlined_call_operand.vmem [shape: f32[16,128], index: 5, kind: output, shape index: {}]
  %s6 = sld [smem:[#allocation0]]
  $region30: #{_hashcode_forward_impl.1} parent=0
    _
  %s8 = ssub.s32 1, %s6
  %s9 = scalar_select 0, %s8, %s6
  // Predicated region
  $region2: #{_hashcode_forward_impl.1} parent=0 // pred_check
    _
  $region3: #{_hashcode_forward_impl.1} parent=0 // pred_check_branch
    %11 = sbr.rel (0) target = $region5
  $region4: #{_hashcode_forward_impl.1} parent=0 // pred_region
    _
  $region5: #{_hashcode_forward_impl.1} parent=0 // pred_fallthru
    _
  // Predicated region
  $region6: #{_hashcode_forward_impl.1} parent=0 // pred_check
    _
  $region7: #{_hashcode_forward_impl.1} parent=0 // pred_check_branch
    %13 = sbr.rel (0) target = $region9
  $region8: #{_hashcode_forward_impl.1} parent=0 // pred_region
    _
  $region9: #{_hashcode_forward_impl.1} parent=0 // pred_fallthru
    _
  // Predicated region
  $region10: #{_hashcode_forward_impl.1} parent=0 // pred_check
    _
  $region11: #{_hashcode_forward_impl.1} parent=0 // pred_check_branch
    %15 = sbr.rel (0) target = $region13
  $region12: #{_hashcode_forward_impl.1} parent=0 // pred_region
    _
  $region13: #{_hashcode_forward_impl.1} parent=0 // pred_fallthru
    _
  // Predicated region
  $region14: #{_hashcode_forward_impl.1} parent=0 // pred_check
    _
  $region15: #{_hashcode_forward_impl.1} parent=0 // pred_check_branch
    %17 = sbr.rel (0) target = $region17
  $region16: #{_hashcode_forward_impl.1} parent=0 // pred_region
    _
  $region17: #{_hashcode_forward_impl.1} parent=0 // pred_fallthru
    _
  // Predicated region
  $region18: #{_hashcode_forward_impl.1} parent=0 // pred_check
    _
  $region19: #{_hashcode_forward_impl.1} parent=0 // pred_check_branch
    %19 = sbr.rel (0) target = $region21
  $region20: #{_hashcode_forward_impl.1} parent=0 // pred_region
    _
  $region21: #{_hashcode_forward_impl.1} parent=0 // pred_fallthru
    _
  %v20 = vld [vmem:[%s0] sm:$0xff]
  %v21 = vld [vmem:[%s0 + $0x8] sm:$0xff]
  %v22 = vld [vmem:[%s1] sm:$0xff]
  %v23 = vld [vmem:[%s1 + $0x8] sm:$0xff]
  %v24 = vld [vmem:[%s1 + $0x10] sm:$0xff]
  %v25 = vld [vmem:[%s1 + $0x18] sm:$0xff]
  %v26 = vld [vmem:[%s1 + $0x20] sm:$0xff]
  %v27 = vld [vmem:[%s1 + $0x28] sm:$0xff]
  %v28 = vld [vmem:[%s1 + $0x30] sm:$0xff]
  %v29 = vld [vmem:[%s1 + $0x38] sm:$0xff]
  %v30 = vld [vmem:[%s1 + $0x40] sm:$0xff]
  %v31 = vld [vmem:[%s1 + $0x48] sm:$0xff]
  %v32 = vld [vmem:[%s1 + $0x50] sm:$0xff]
  %v33 = vld [vmem:[%s1 + $0x58] sm:$0xff]
  %v34 = vld [vmem:[%s1 + $0x60] sm:$0xff]
  %v35 = vld [vmem:[%s1 + $0x68] sm:$0xff]
  %v36 = vld [vmem:[%s1 + $0x70] sm:$0xff]
  %v37 = vld [vmem:[%s1 + $0x78] sm:$0xff]
  %v38 = vld [vmem:[%s1 + $0x80] sm:$0xff]
  %v39 = vld [vmem:[%s1 + $0x88] sm:$0xff]
  %v40 = vld [vmem:[%s1 + $0x90] sm:$0xff]
  %v41 = vld [vmem:[%s1 + $0x98] sm:$0xff]
  %v42 = vld [vmem:[%s1 + $0xa0] sm:$0xff]
  %v43 = vld [vmem:[%s1 + $0xa8] sm:$0xff]
  %v44 = vld [vmem:[%s1 + $0xb0] sm:$0xff]
  %v45 = vld [vmem:[%s1 + $0xb8] sm:$0xff]
  %v46 = vld [vmem:[%s1 + $0xc0] sm:$0xff]
  %v47 = vld [vmem:[%s1 + $0xc8] sm:$0xff]
  %v48 = vld [vmem:[%s1 + $0xd0] sm:$0xff]
  %v49 = vld [vmem:[%s1 + $0xd8] sm:$0xff]
  %v50 = vld [vmem:[%s1 + $0xe0] sm:$0xff]
  %v51 = vld [vmem:[%s1 + $0xe8] sm:$0xff]
  %v52 = vld [vmem:[%s1 + $0xf0] sm:$0xff]
  %v53 = vld [vmem:[%s1 + $0xf8] sm:$0xff]
  %v54 = vld [vmem:[%s2] sm:$0x3]
  %v56 = vperm.slane %v54, 0
  %v57 = vperm.slane %v54, 1
  %v62 = vunpack.c.l.b16 %v20
  %v63 = vunpack.c.h.b16 %v20
  %v64 = vunpack.c.l.b16 %v21
  %v65 = vunpack.c.h.b16 %v21
  %v66 = vpack.c.b16 %v64, %v62
  %v67 = vpack.c.b16 %v65, %v63
  %v102 = vunpack.c.l.b16 %v22
  %v103 = vunpack.c.h.b16 %v22
  %v104 = vunpack.c.l.b16 %v23
  %v105 = vunpack.c.h.b16 %v23
  %v106 = vunpack.c.l.b16 %v24
  %v107 = vunpack.c.h.b16 %v24
  %v108 = vunpack.c.l.b16 %v25
  %v109 = vunpack.c.h.b16 %v25
  %v110 = vunpack.c.l.b16 %v26
  %v111 = vunpack.c.h.b16 %v26
  %v112 = vunpack.c.l.b16 %v27
  %v113 = vunpack.c.h.b16 %v27
  %v114 = vunpack.c.l.b16 %v28
  %v115 = vunpack.c.h.b16 %v28
  %v116 = vunpack.c.l.b16 %v29
  %v117 = vunpack.c.h.b16 %v29
  %v118 = vunpack.c.l.b16 %v30
  %v119 = vunpack.c.h.b16 %v30
  %v120 = vunpack.c.l.b16 %v31
  %v121 = vunpack.c.h.b16 %v31
  %v122 = vunpack.c.l.b16 %v32
  %v123 = vunpack.c.h.b16 %v32
  %v124 = vunpack.c.l.b16 %v33
  %v125 = vunpack.c.h.b16 %v33
  %v126 = vunpack.c.l.b16 %v34
  %v127 = vunpack.c.h.b16 %v34
  %v128 = vunpack.c.l.b16 %v35
  %v129 = vunpack.c.h.b16 %v35
  %v130 = vunpack.c.l.b16 %v36
  %v131 = vunpack.c.h.b16 %v36
  %v132 = vunpack.c.l.b16 %v37
  %v133 = vunpack.c.h.b16 %v37
  %v134 = vunpack.c.l.b16 %v38
  %v135 = vunpack.c.h.b16 %v38
  %v136 = vunpack.c.l.b16 %v39
  %v137 = vunpack.c.h.b16 %v39
  %v138 = vunpack.c.l.b16 %v40
  %v139 = vunpack.c.h.b16 %v40
  %v140 = vunpack.c.l.b16 %v41
  %v141 = vunpack.c.h.b16 %v41
  %v142 = vunpack.c.l.b16 %v42
  %v143 = vunpack.c.h.b16 %v42
  %v144 = vunpack.c.l.b16 %v43
  %v145 = vunpack.c.h.b16 %v43
  %v146 = vunpack.c.l.b16 %v44
  %v147 = vunpack.c.h.b16 %v44
  %v148 = vunpack.c.l.b16 %v45
  %v149 = vunpack.c.h.b16 %v45
  %v150 = vunpack.c.l.b16 %v46
  %v151 = vunpack.c.h.b16 %v46
  %v152 = vunpack.c.l.b16 %v47
  %v153 = vunpack.c.h.b16 %v47
  %v154 = vunpack.c.l.b16 %v48
  %v155 = vunpack.c.h.b16 %v48
  %v156 = vunpack.c.l.b16 %v49
  %v157 = vunpack.c.h.b16 %v49
  %v158 = vunpack.c.l.b16 %v50
  %v159 = vunpack.c.h.b16 %v50
  %v160 = vunpack.c.l.b16 %v51
  %v161 = vunpack.c.h.b16 %v51
  %v162 = vunpack.c.l.b16 %v52
  %v163 = vunpack.c.h.b16 %v52
  %v164 = vunpack.c.l.b16 %v53
  %v165 = vunpack.c.h.b16 %v53
  %v166 = vpack.c.b16 %v104, %v102
  %v167 = vpack.c.b16 %v105, %v103
  %v168 = vpack.c.b16 %v108, %v106
  %v169 = vpack.c.b16 %v109, %v107
  %v170 = vpack.c.b16 %v112, %v110
  %v171 = vpack.c.b16 %v113, %v111
  %v172 = vpack.c.b16 %v116, %v114
  %v173 = vpack.c.b16 %v117, %v115
  %v174 = vpack.c.b16 %v120, %v118
  %v175 = vpack.c.b16 %v121, %v119
  %v176 = vpack.c.b16 %v124, %v122
  %v177 = vpack.c.b16 %v125, %v123
  %v178 = vpack.c.b16 %v128, %v126
  %v179 = vpack.c.b16 %v129, %v127
  %v180 = vpack.c.b16 %v132, %v130
  %v181 = vpack.c.b16 %v133, %v131
  %v182 = vpack.c.b16 %v136, %v134
  %v183 = vpack.c.b16 %v137, %v135
  %v184 = vpack.c.b16 %v140, %v138
  %v185 = vpack.c.b16 %v141, %v139
  %v186 = vpack.c.b16 %v144, %v142
  %v187 = vpack.c.b16 %v145, %v143
  %v188 = vpack.c.b16 %v148, %v146
  %v189 = vpack.c.b16 %v149, %v147
  %v190 = vpack.c.b16 %v152, %v150
  %v191 = vpack.c.b16 %v153, %v151
  %v192 = vpack.c.b16 %v156, %v154
  %v193 = vpack.c.b16 %v157, %v155
  %v194 = vpack.c.b16 %v160, %v158
  %v195 = vpack.c.b16 %v161, %v159
  %v196 = vpack.c.b16 %v164, %v162
  %v197 = vpack.c.b16 %v165, %v163
  %230 = vmatpush.bf16.msra.mxu0 %v180
  %231 = vmatpush.bf16.msra.mxu0 %v178
  %232 = vmatpush.bf16.msra.mxu0 %v176
  %233 = vmatpush.bf16.msra.mxu0 %v174
  %234 = vmatpush.bf16.msra.mxu0 %v172
  %235 = vmatpush.bf16.msra.mxu0 %v170
  %236 = vmatpush.bf16.msra.mxu0 %v168
  %237 = vmatpush.bf16.msra.mxu0 %v166
  %238 = vmatmul.bf16.gmra.mxu0 %v66
  %v239 = vpop.f32.mrf.mxu0
  %v240 = vadd.f32 %v56, %v239
  %v241 = vpop.f32.mrf.mxu0
  %v242 = vadd.f32 %v56, %v241
  %243 = vdwg.mxu0
  %244 = vmatpush.bf16.msra.mxu0 %v196
  %245 = vmatpush.bf16.msra.mxu0 %v194
  %246 = vmatpush.bf16.msra.mxu0 %v192
  %247 = vmatpush.bf16.msra.mxu0 %v190
  %248 = vmatpush.bf16.msra.mxu0 %v188
  %249 = vmatpush.bf16.msra.mxu0 %v186
  %250 = vmatpush.bf16.msra.mxu0 %v184
  %251 = vmatpush.bf16.msra.mxu0 %v182
  %252 = vmatmul.bf16.gmra.mxu0 %v67
  %v253 = vpop.f32.mrf.mxu0
  %v254 = vadd.f32 %v240, %v253
  %v255 = vpop.f32.mrf.mxu0
  %v256 = vadd.f32 %v242, %v255
  %257 = vdwg.mxu0
  %258 = vmatpush.bf16.msra.mxu0 %v181
  %259 = vmatpush.bf16.msra.mxu0 %v179
  %260 = vmatpush.bf16.msra.mxu0 %v177
  %261 = vmatpush.bf16.msra.mxu0 %v175
  %262 = vmatpush.bf16.msra.mxu0 %v173
  %263 = vmatpush.bf16.msra.mxu0 %v171
  %264 = vmatpush.bf16.msra.mxu0 %v169
  %265 = vmatpush.bf16.msra.mxu0 %v167
  %266 = vmatmul.bf16.gmra.mxu0 %v66
  %v267 = vpop.f32.mrf.mxu0
  %v268 = vadd.f32 %v57, %v267
  %v269 = vpop.f32.mrf.mxu0
  %v270 = vadd.f32 %v57, %v269
  %271 = vdwg.mxu0
  %272 = vmatpush.bf16.msra.mxu0 %v197
  %273 = vmatpush.bf16.msra.mxu0 %v195
  %274 = vmatpush.bf16.msra.mxu0 %v193
  %275 = vmatpush.bf16.msra.mxu0 %v191
  %276 = vmatpush.bf16.msra.mxu0 %v189
  %277 = vmatpush.bf16.msra.mxu0 %v187
  %278 = vmatpush.bf16.msra.mxu0 %v185
  %279 = vmatpush.bf16.msra.mxu0 %v183
  %280 = vmatmul.bf16.gmra.mxu0 %v67
  %v281 = vpop.f32.mrf.mxu0
  %v282 = vadd.f32 %v268, %v281
  %v283 = vpop.f32.mrf.mxu0
  %v284 = vadd.f32 %v270, %v283
  %285 = vdwg.mxu0
  %v286 = vmax.f32 %v254, 0.0
  %v287 = vmax.f32 %v282, 0.0
  %v288 = vmax.f32 %v256, 0.0
  %v289 = vmax.f32 %v284, 0.0
  %v290 = vpack.c.bf16 %v288, %v286
  %v291 = vpack.c.bf16 %v289, %v287
  %v292 = vld [vmem:[%s3] sm:$0xf]
  %v293 = vld [vmem:[%s3 + $0x4] sm:$0xf]
  %v294 = vld [vmem:[%s3 + $0x8] sm:$0xf]
  %v295 = vld [vmem:[%s3 + $0xc] sm:$0xf]
  %v296 = vld [vmem:[%s3 + $0x10] sm:$0xf]
  %v297 = vld [vmem:[%s3 + $0x14] sm:$0xf]
  %v298 = vld [vmem:[%s3 + $0x18] sm:$0xf]
  %v299 = vld [vmem:[%s3 + $0x1c] sm:$0xf]
  %v300 = vld [vmem:[%s3 + $0x20] sm:$0xf]
  %v301 = vld [vmem:[%s3 + $0x24] sm:$0xf]
  %v302 = vld [vmem:[%s3 + $0x28] sm:$0xf]
  %v303 = vld [vmem:[%s3 + $0x2c] sm:$0xf]
  %v304 = vld [vmem:[%s3 + $0x30] sm:$0xf]
  %v305 = vld [vmem:[%s3 + $0x34] sm:$0xf]
  %v306 = vld [vmem:[%s3 + $0x38] sm:$0xf]
  %v307 = vld [vmem:[%s3 + $0x3c] sm:$0xf]
  %v308 = vld [vmem:[%s3 + $0x40] sm:$0xf]
  %v309 = vld [vmem:[%s3 + $0x44] sm:$0xf]
  %v310 = vld [vmem:[%s3 + $0x48] sm:$0xf]
  %v311 = vld [vmem:[%s3 + $0x4c] sm:$0xf]
  %v312 = vld [vmem:[%s3 + $0x50] sm:$0xf]
  %v313 = vld [vmem:[%s3 + $0x54] sm:$0xf]
  %v314 = vld [vmem:[%s3 + $0x58] sm:$0xf]
  %v315 = vld [vmem:[%s3 + $0x5c] sm:$0xf]
  %v316 = vld [vmem:[%s3 + $0x60] sm:$0xf]
  %v317 = vld [vmem:[%s3 + $0x64] sm:$0xf]
  %v318 = vld [vmem:[%s3 + $0x68] sm:$0xf]
  %v319 = vld [vmem:[%s3 + $0x6c] sm:$0xf]
  %v320 = vld [vmem:[%s3 + $0x70] sm:$0xf]
  %v321 = vld [vmem:[%s3 + $0x74] sm:$0xf]
  %v322 = vld [vmem:[%s3 + $0x78] sm:$0xf]
  %v323 = vld [vmem:[%s3 + $0x7c] sm:$0xf]
  %v324 = vld [vmem:[%s4] sm:$0x1]
  %v326 = vperm.slane %v324, 0
  %v360 = vunpack.c.l.b16 %v292
  %v361 = vunpack.c.l.b16 %v293
  %v362 = vunpack.c.l.b16 %v294
  %v363 = vunpack.c.l.b16 %v295
  %v364 = vunpack.c.l.b16 %v296
  %v365 = vunpack.c.l.b16 %v297
  %v366 = vunpack.c.l.b16 %v298
  %v367 = vunpack.c.l.b16 %v299
  %v368 = vunpack.c.l.b16 %v300
  %v369 = vunpack.c.l.b16 %v301
  %v370 = vunpack.c.l.b16 %v302
  %v371 = vunpack.c.l.b16 %v303
  %v372 = vunpack.c.l.b16 %v304
  %v373 = vunpack.c.l.b16 %v305
  %v374 = vunpack.c.l.b16 %v306
  %v375 = vunpack.c.l.b16 %v307
  %v376 = vunpack.c.l.b16 %v308
  %v377 = vunpack.c.l.b16 %v309
  %v378 = vunpack.c.l.b16 %v310
  %v379 = vunpack.c.l.b16 %v311
  %v380 = vunpack.c.l.b16 %v312
  %v381 = vunpack.c.l.b16 %v313
  %v382 = vunpack.c.l.b16 %v314
  %v383 = vunpack.c.l.b16 %v315
  %v384 = vunpack.c.l.b16 %v316
  %v385 = vunpack.c.l.b16 %v317
  %v386 = vunpack.c.l.b16 %v318
  %v387 = vunpack.c.l.b16 %v319
  %v388 = vunpack.c.l.b16 %v320
  %v389 = vunpack.c.l.b16 %v321
  %v390 = vunpack.c.l.b16 %v322
  %v391 = vunpack.c.l.b16 %v323
  %v392 = vpack.c.b16 %v361, %v360
  %v393 = vpack.c.b16 %v363, %v362
  %v394 = vpack.c.b16 %v365, %v364
  %v395 = vpack.c.b16 %v367, %v366
  %v396 = vpack.c.b16 %v369, %v368
  %v397 = vpack.c.b16 %v371, %v370
  %v398 = vpack.c.b16 %v373, %v372
  %v399 = vpack.c.b16 %v375, %v374
  %v400 = vpack.c.b16 %v377, %v376
  %v401 = vpack.c.b16 %v379, %v378
  %v402 = vpack.c.b16 %v381, %v380
  %v403 = vpack.c.b16 %v383, %v382
  %v404 = vpack.c.b16 %v385, %v384
  %v405 = vpack.c.b16 %v387, %v386
  %v406 = vpack.c.b16 %v389, %v388
  %v407 = vpack.c.b16 %v391, %v390
  %424 = vmatpush.bf16.msra.mxu0 %v399
  %425 = vmatpush.bf16.msra.mxu0 %v398
  %426 = vmatpush.bf16.msra.mxu0 %v397
  %427 = vmatpush.bf16.msra.mxu0 %v396
  %428 = vmatpush.bf16.msra.mxu0 %v395
  %429 = vmatpush.bf16.msra.mxu0 %v394
  %430 = vmatpush.bf16.msra.mxu0 %v393
  %431 = vmatpush.bf16.msra.mxu0 %v392
  %432 = vmatmul.bf16.gmra.mxu0 %v290
  %v433 = vpop.f32.mrf.mxu0
  %v434 = vadd.f32 %v326, %v433
  %v435 = vpop.f32.mrf.mxu0
  %v436 = vadd.f32 %v326, %v435
  %437 = vdwg.mxu0
  %438 = vmatpush.bf16.msra.mxu0 %v407
  %439 = vmatpush.bf16.msra.mxu0 %v406
  %440 = vmatpush.bf16.msra.mxu0 %v405
  %441 = vmatpush.bf16.msra.mxu0 %v404
  %442 = vmatpush.bf16.msra.mxu0 %v403
  %443 = vmatpush.bf16.msra.mxu0 %v402
  %444 = vmatpush.bf16.msra.mxu0 %v401
  %445 = vmatpush.bf16.msra.mxu0 %v400
  %446 = vmatmul.bf16.gmra.mxu0 %v291
  %v447 = vpop.f32.mrf.mxu0
  %v448 = vadd.f32 %v434, %v447
  %v449 = vpop.f32.mrf.mxu0
  %v450 = vadd.f32 %v436, %v449
  %451 = vdwg.mxu0
  %v452 = vmul.f32 %v448, 1.5
  %v453 = vmul.f32 %v450, 1.5
  %v454 = vtanh.pop %v452
  %v455 = vtanh.pop %v453
  %456 = vst [vmem:[%s5] sm:$0xff] %v454
  %457 = vst [vmem:[%s5 + $0x8] sm:$0xff] %v455
  // Predicated region
  $region22: #{_hashcode_forward_impl.1} parent=0 // pred_check
    _
  $region23: #{_hashcode_forward_impl.1} parent=0 // pred_check_branch
    %459 = sbr.rel (0) target = $region25
  $region24: #{_hashcode_forward_impl.1} parent=0 // pred_region
    _
  $region25: #{_hashcode_forward_impl.1} parent=0 // pred_fallthru
    _
  // Predicated region
  $region26: #{_hashcode_forward_impl.1} parent=0 // pred_check
    _
  $region27: #{_hashcode_forward_impl.1} parent=0 // pred_check_branch
    %461 = sbr.rel (0) target = $region29
  $region28: #{_hashcode_forward_impl.1} parent=0 // pred_region
    _
  $region29: #{_hashcode_forward_impl.1} parent=0 // pred_fallthru
    _

</llo_original>
